<compile_context>
chip_gen: v5e
topology: v5e:2x2
jax: 0.10.0
libtpu: 0.0.40
codegen_flags: <defaults>
</compile_context>

<pallas_src>
import functools

import jax
import jax.numpy as jnp
from jax.experimental import pallas as pl
from jax.experimental.pallas import tpu as pltpu

# Small, forward-consistent sizes (the real module uses 512/512/1/1024).
HIDDEN_SIZE = 32      # in_size of the MLP / per-glimpse feature size
FLAT_MLP_SIZE = 64    # mid_size of the MLP
FLAT_GLIMPSES = 1     # out_size of the MLP (number of attention glimpses)
FLAT_OUT_SIZE = 128   # linear_merge output size


def attflat_kernel(x_ref, mask_ref,
                   w1_ref, b1_ref, w2_ref, b2_ref, w3_ref, b3_ref,
                   out_ref, *, s_chunk):
    # x_ref: (BB, S, H) bf16, mask_ref: (BB, S) f32, out_ref: (BB, OUT) f32
    BB, S, H = x_ref.shape
    SC = s_chunk
    num_chunks = S // SC

    w1 = w1_ref[...]            # (H, MID) bf16
    b1 = b1_ref[...]            # (1, MID) f32
    w2_row = w2_ref[...]        # (1, MID) f32
    b2 = b2_ref[0, 0]           # scalar (SMEM); softmax-invariant but kept for fidelity

    # --- Pass 1: attention logits, chunked over S ------------------------------
    # The (BB*SC, MID) ReLU intermediate only ever exists one chunk at a time.
    logits = []
    for c in range(num_chunks):               # static, short trip count -> unrolled
        xc = x_ref[:, c * SC:(c + 1) * SC, :]                       # (BB, SC, H) bf16
        h = jnp.dot(xc.reshape(BB * SC, H), w1,
                    preferred_element_type=jnp.float32)             # MXU, f32 acc
        h = jnp.maximum(h + b1, 0.0).reshape(BB, SC, -1)            # (BB, SC, MID) f32
        # G == 1: VPU multiply + lane reduce instead of an N=1 matmul.
        # (If the XLU saturates after bf16, switch back to h @ w2 on the MXU.)
        logits.append(jnp.sum(h * w2_row, axis=-1) + b2)            # (BB, SC) f32
    att = logits[0] if num_chunks == 1 else jnp.concatenate(logits, axis=-1)

    # --- masked_fill(mask, -1e9) + softmax over the sequence (lane) axis, f32 --
    att = jnp.where(mask_ref[...] > 0.0, jnp.float32(-1e9), att)
    att = att - jnp.max(att, axis=-1, keepdims=True)
    e = jnp.exp(att)
    p = e / jnp.sum(e, axis=-1, keepdims=True)                      # exact divide

    # --- Pass 2: glimpse-weighted sum over S (chunked, f32 VPU math) -----------
    xa = jnp.zeros((BB, H), jnp.float32)
    for c in range(num_chunks):
        xc = x_ref[:, c * SC:(c + 1) * SC, :].astype(jnp.float32)   # upcast once
        pc = p[:, c * SC:(c + 1) * SC]                              # (BB, SC)
        xa = xa + jnp.sum(pc[:, :, None] * xc, axis=1)              # (BB, H)

    # --- linear_merge: (BB, H*G) @ (H*G, OUT) on the MXU in bf16, f32 acc ------
    out = jnp.dot(xa.astype(jnp.bfloat16), w3_ref[...],
                  preferred_element_type=jnp.float32) + b3_ref[...]
    out_ref[...] = out.astype(out_ref.dtype)


def att_flat(x, x_mask, params, *, block_b=8, s_chunk=None, vmem_limit_bytes=None):
    """x: (B, S, H) f32; x_mask: (B, 1, 1, S) bool. Returns (B, FLAT_OUT) f32."""
    B, S, H = x.shape
    w1, b1, w2, b2, w3, b3 = params
    MID = w1.shape[1]
    G = w2.shape[1]
    OUT = w3.shape[1]
    assert G == 1, "kernel specializes the single-glimpse (FLAT_GLIMPSES=1) case"
    # TODO(synk): for G > 1 fall back to an (S, G) logits matmul + per-glimpse sums.

    if s_chunk is None:
        s_chunk = S if S <= 256 else 256
    assert S % s_chunk == 0, "sequence length must divide the S chunk size"

    # Torch: mask.squeeze(1).squeeze(1) -> (B, S); keep it lane-dense as float.
    mask = x_mask.reshape(B, S).astype(jnp.float32)
    w2_row = w2.reshape(1, MID).astype(jnp.float32)     # (MID,1) column -> (1,MID) row
    b2_s = b2.reshape(1, 1).astype(jnp.float32)         # scalar, SMEM

    # bf16 MXU operands; everything else stays f32.
    x_bf = x.astype(jnp.bfloat16)
    w1_bf = w1.astype(jnp.bfloat16)
    w3_bf = w3.astype(jnp.bfloat16)

    # Pad the batch to a multiple of the batch block (sublane-dense output tiles).
    BB = block_b
    num_blocks = pl.cdiv(B, BB)
    Bpad = num_blocks * BB
    if Bpad != B:
        x_bf = jnp.pad(x_bf, ((0, Bpad - B), (0, 0), (0, 0)))
        mask = jnp.pad(mask, ((0, Bpad - B), (0, 0)))   # padded rows unmasked -> safe softmax

    kernel = functools.partial(attflat_kernel, s_chunk=s_chunk)

    out = pl.pallas_call(
        kernel,
        out_shape=jax.ShapeDtypeStruct((Bpad, OUT), jnp.float32),
        grid_spec=pltpu.PrefetchScalarGridSpec(
            num_scalar_prefetch=0,
            grid=(num_blocks,),
            in_specs=[
                pl.BlockSpec((BB, S, H), lambda i: (i, 0, 0)),    # x (bf16)
                pl.BlockSpec((BB, S), lambda i: (i, 0)),          # mask (lane-dense f32)
                pl.BlockSpec((H, MID), lambda i: (0, 0)),         # w1 (bf16)
                pl.BlockSpec((1, MID), lambda i: (0, 0)),         # b1 (f32)
                pl.BlockSpec((1, MID), lambda i: (0, 0)),         # w2 row (f32)
                pl.BlockSpec(memory_space=pltpu.MemorySpace.SMEM),  # b2 scalar
                pl.BlockSpec((G * H, OUT), lambda i: (0, 0)),     # w3 (bf16)
                pl.BlockSpec((1, OUT), lambda i: (0, 0)),         # b3 (f32)
            ],
            out_specs=pl.BlockSpec((BB, OUT), lambda i: (i, 0)),
        ),
        compiler_params=pltpu.CompilerParams(
            dimension_semantics=("parallel",),
            vmem_limit_bytes=vmem_limit_bytes),
    )(x_bf, mask, w1_bf, b1, w2_row, b2_s, w3_bf, b3)
    return out[:B]


def att_flat_ref(x, x_mask, params, mxu_dtype=jnp.float32):
    """Pure-JAX reference mirroring the torch forward.

    With mxu_dtype=jnp.float32 this is the exact original semantics; with
    jnp.bfloat16 it applies the same quantization points as the kernel
    (x / w1 / xa / w3 rounded to bf16, f32 accumulation) for a tight check.
    """
    w1, b1, w2, b2, w3, b3 = params
    B, S, H = x.shape
    xq = x.astype(mxu_dtype).astype(jnp.float32)
    h = jnp.dot(xq.astype(mxu_dtype), w1.astype(mxu_dtype),
                preferred_element_type=jnp.float32)
    h = jnp.maximum(h + b1, 0.0)
    att = h @ w2 + b2                                    # (B, S, G) f32
    m = x_mask.reshape(B, S, 1)
    att = jnp.where(m, jnp.float32(-1e9), att)
    att = jax.nn.softmax(att, axis=1)
    xa = jnp.einsum('bsg,bsh->bgh', att, xq).reshape(B, -1)
    out = jnp.dot(xa.astype(mxu_dtype), w3.astype(mxu_dtype),
                  preferred_element_type=jnp.float32) + b3
    return out


def init_params(key):
    k1, k2, k3, k4, k5, k6 = jax.random.split(key, 6)
    s1 = 1.0 / jnp.sqrt(HIDDEN_SIZE)
    s2 = 1.0 / jnp.sqrt(FLAT_MLP_SIZE)
    s3 = 1.0 / jnp.sqrt(HIDDEN_SIZE * FLAT_GLIMPSES)
    w1 = jax.random.uniform(k1, (HIDDEN_SIZE, FLAT_MLP_SIZE), jnp.float32, -s1, s1)
    b1 = jax.random.uniform(k2, (1, FLAT_MLP_SIZE), jnp.float32, -s1, s1)
    w2 = jax.random.uniform(k3, (FLAT_MLP_SIZE, FLAT_GLIMPSES), jnp.float32, -s2, s2)
    b2 = jax.random.uniform(k4, (1, FLAT_GLIMPSES), jnp.float32, -s2, s2)
    w3 = jax.random.uniform(k5, (HIDDEN_SIZE * FLAT_GLIMPSES, FLAT_OUT_SIZE),
                            jnp.float32, -s3, s3)
    b3 = jax.random.uniform(k6, (1, FLAT_OUT_SIZE), jnp.float32, -s3, s3)
    return (w1, b1, w2, b2, w3, b3)


if __name__ == "__main__":
    key = jax.random.PRNGKey(0)
    kx, kp = jax.random.split(key)

    # B=10 exercises the multi-step grid + batch padding; S=16 with s_chunk=8
    # exercises the chunked logits / weighted-sum loops (2 chunks).
    B, S = 10, 16
    x = jax.random.normal(kx, (B, S, HIDDEN_SIZE), jnp.float32)
    # mask padding positions: tail of batch elements 1 and 7
    x_mask = (jnp.zeros((B, 1, 1, S), dtype=bool)
              .at[1, 0, 0, 12:].set(True)
              .at[7, 0, 0, 10:].set(True))

    params = init_params(kp)

    out = att_flat(x, x_mask, params, block_b=8, s_chunk=8)
    out = jax.block_until_ready(out)
    assert out.shape == (B, FLAT_OUT_SIZE)

    # Tight check vs. a reference using the same bf16 quantization points.
    ref_match = att_flat_ref(x, x_mask, params, mxu_dtype=jnp.bfloat16)
    err_match = float(jnp.max(jnp.abs(out - ref_match)))
    assert jnp.allclose(out, ref_match, atol=2e-3, rtol=2e-3), err_match

    # Looser sanity check vs. the full-f32 reference (bf16 MXU operand rounding).
    ref_f32 = att_flat_ref(x, x_mask, params, mxu_dtype=jnp.float32)
    err_f32 = float(jnp.max(jnp.abs(out - ref_f32)))
    assert jnp.allclose(out, ref_f32, atol=5e-2, rtol=5e-2), err_f32

    print("KERNEL_OK")
</pallas_src>

<mosaic_0001>
module attributes {stable_mosaic.version = 11 : i64} {
  func.func @attflat_kernel(%arg0: i32, %arg1: memref<8x16x32xbf16, #tpu.memory_space<vmem>>, %arg2: memref<8x16xf32, #tpu.memory_space<vmem>>, %arg3: memref<32x64xbf16, #tpu.memory_space<vmem>>, %arg4: memref<1x64xf32, #tpu.memory_space<vmem>>, %arg5: memref<1x64xf32, #tpu.memory_space<vmem>>, %arg6: memref<1x1xf32, #tpu.memory_space<smem>>, %arg7: memref<32x128xbf16, #tpu.memory_space<vmem>>, %arg8: memref<1x128xf32, #tpu.memory_space<vmem>>, %arg9: memref<8x128xf32, #tpu.memory_space<vmem>>) attributes {dimension_semantics = [#tpu.dimension_semantics<parallel>], iteration_bounds = array<i64: 2>, scalar_prefetch = 0 : i64, scratch_operands = 0 : i64, tpu.core_type = #tpu.core_type<tc>, window_params = [{transform_indices = @transform_0, window_bounds = array<i64: 8, 16, 32>}, {transform_indices = @transform_1, window_bounds = array<i64: 8, 16>}, {pipeline_mode = #tpu.pipeline_mode<synchronous>, transform_indices = @transform_2, window_bounds = array<i64: 32, 64>}, {pipeline_mode = #tpu.pipeline_mode<synchronous>, transform_indices = @transform_3, window_bounds = array<i64: 1, 64>}, {pipeline_mode = #tpu.pipeline_mode<synchronous>, transform_indices = @transform_4, window_bounds = array<i64: 1, 64>}, {transform_indices = @transform_5, window_bounds = array<i64: 1, 1>}, {pipeline_mode = #tpu.pipeline_mode<synchronous>, transform_indices = @transform_6, window_bounds = array<i64: 32, 128>}, {pipeline_mode = #tpu.pipeline_mode<synchronous>, transform_indices = @transform_7, window_bounds = array<i64: 1, 128>}, {transform_indices = @transform_8, window_bounds = array<i64: 8, 128>}]} {
    %c0 = arith.constant 0 : index
    %c0_0 = arith.constant 0 : index
    %0 = vector.load %arg3[%c0, %c0_0] : memref<32x64xbf16, #tpu.memory_space<vmem>>, vector<32x64xbf16>
    %c0_1 = arith.constant 0 : index
    %c0_2 = arith.constant 0 : index
    %1 = vector.load %arg4[%c0_1, %c0_2] : memref<1x64xf32, #tpu.memory_space<vmem>>, vector<1x64xf32>
    %c0_3 = arith.constant 0 : index
    %c0_4 = arith.constant 0 : index
    %2 = vector.load %arg5[%c0_3, %c0_4] : memref<1x64xf32, #tpu.memory_space<vmem>>, vector<1x64xf32>
    %c0_5 = arith.constant 0 : index
    %c0_6 = arith.constant 0 : index
    %3 = memref.load %arg6[%c0_5, %c0_6] : memref<1x1xf32, #tpu.memory_space<smem>>
    %c0_7 = arith.constant 0 : index
    %c0_8 = arith.constant 0 : index
    %c0_9 = arith.constant 0 : index
    %4 = vector.load %arg1[%c0_7, %c0_8, %c0_9] : memref<8x16x32xbf16, #tpu.memory_space<vmem>>, vector<8x8x32xbf16>
    %5 = vector.shape_cast %4 : vector<8x8x32xbf16> to vector<64x32xbf16>
    %cst = arith.constant dense<0.000000e+00> : vector<64x64xf32>
    %6 = tpu.matmul %5, %0, %cst {dimension_numbers = #tpu.dot_dimension_numbers<[1], [0], [0], [1], [0, 0, 1, 1], [], []>} : vector<64x32xbf16>, vector<32x64xbf16>, vector<64x64xf32> -> vector<64x64xf32>
    %7 = vector.broadcast %1 : vector<1x64xf32> to vector<64x64xf32>
    %8 = arith.addf %6, %7 : vector<64x64xf32>
    %cst_10 = arith.constant 0.000000e+00 : f32
    %9 = vector.broadcast %cst_10 : f32 to vector<64x64xf32>
    %10 = arith.maximumf %8, %9 : vector<64x64xf32>
    %11 = vector.shape_cast %10 : vector<64x64xf32> to vector<8x8x64xf32>
    %12 = vector.shape_cast %2 : vector<1x64xf32> to vector<1x1x64xf32>
    %13 = vector.broadcast %12 : vector<1x1x64xf32> to vector<8x8x64xf32>
    %14 = arith.mulf %11, %13 : vector<8x8x64xf32>
    %cst_11 = arith.constant dense<0.000000e+00> : vector<8x8xf32>
    %15 = vector.multi_reduction <add>, %14, %cst_11 [2] : vector<8x8x64xf32> to vector<8x8xf32>
    %16 = vector.broadcast %3 : f32 to vector<8x8xf32>
    %17 = arith.addf %15, %16 : vector<8x8xf32>
    %c0_12 = arith.constant 0 : index
    %c8 = arith.constant 8 : index
    %c0_13 = arith.constant 0 : index
    %18 = vector.load %arg1[%c0_12, %c8, %c0_13] : memref<8x16x32xbf16, #tpu.memory_space<vmem>>, vector<8x8x32xbf16>
    %19 = vector.shape_cast %18 : vector<8x8x32xbf16> to vector<64x32xbf16>
    %cst_14 = arith.constant dense<0.000000e+00> : vector<64x64xf32>
    %20 = tpu.matmul %19, %0, %cst_14 {dimension_numbers = #tpu.dot_dimension_numbers<[1], [0], [0], [1], [0, 0, 1, 1], [], []>} : vector<64x32xbf16>, vector<32x64xbf16>, vector<64x64xf32> -> vector<64x64xf32>
    %21 = vector.broadcast %1 : vector<1x64xf32> to vector<64x64xf32>
    %22 = arith.addf %20, %21 : vector<64x64xf32>
    %cst_15 = arith.constant 0.000000e+00 : f32
    %23 = vector.broadcast %cst_15 : f32 to vector<64x64xf32>
    %24 = arith.maximumf %22, %23 : vector<64x64xf32>
    %25 = vector.shape_cast %24 : vector<64x64xf32> to vector<8x8x64xf32>
    %26 = vector.shape_cast %2 : vector<1x64xf32> to vector<1x1x64xf32>
    %27 = vector.broadcast %26 : vector<1x1x64xf32> to vector<8x8x64xf32>
    %28 = arith.mulf %25, %27 : vector<8x8x64xf32>
    %cst_16 = arith.constant dense<0.000000e+00> : vector<8x8xf32>
    %29 = vector.multi_reduction <add>, %28, %cst_16 [2] : vector<8x8x64xf32> to vector<8x8xf32>
    %30 = vector.broadcast %3 : f32 to vector<8x8xf32>
    %31 = arith.addf %29, %30 : vector<8x8xf32>
    %32 = tpu.concatenate %17, %31 in 1 : vector<8x8xf32>, vector<8x8xf32> -> vector<8x16xf32>
    %c0_17 = arith.constant 0 : index
    %c0_18 = arith.constant 0 : index
    %33 = vector.load %arg2[%c0_17, %c0_18] : memref<8x16xf32, #tpu.memory_space<vmem>>, vector<8x16xf32>
    %cst_19 = arith.constant 0.000000e+00 : f32
    %34 = vector.broadcast %cst_19 : f32 to vector<8x16xf32>
    %35 = arith.cmpf ogt, %33, %34 : vector<8x16xf32>
    %cst_20 = arith.constant -1.000000e+09 : f32
    %36 = vector.broadcast %cst_20 : f32 to vector<8x16xf32>
    %37 = arith.select %35, %36, %32 : vector<8x16xi1>, vector<8x16xf32>
    %cst_21 = arith.constant dense<0xFF800000> : vector<8xf32>
    %38 = vector.multi_reduction <maximumf>, %37, %cst_21 [1] : vector<8x16xf32> to vector<8xf32>
    %39 = vector.shape_cast %38 : vector<8xf32> to vector<8x1xf32>
    %40 = vector.broadcast %39 : vector<8x1xf32> to vector<8x16xf32>
    %41 = arith.subf %37, %40 : vector<8x16xf32>
    %42 = math.exp %41 : vector<8x16xf32>
    %cst_22 = arith.constant dense<0.000000e+00> : vector<8xf32>
    %43 = vector.multi_reduction <add>, %42, %cst_22 [1] : vector<8x16xf32> to vector<8xf32>
    %44 = vector.shape_cast %43 : vector<8xf32> to vector<8x1xf32>
    %45 = vector.broadcast %44 : vector<8x1xf32> to vector<8x16xf32>
    %46 = arith.divf %42, %45 : vector<8x16xf32>
    %cst_23 = arith.constant 0.000000e+00 : f32
    %47 = vector.broadcast %cst_23 : f32 to vector<8x32xf32>
    %c0_24 = arith.constant 0 : index
    %c0_25 = arith.constant 0 : index
    %c0_26 = arith.constant 0 : index
    %48 = vector.load %arg1[%c0_24, %c0_25, %c0_26] : memref<8x16x32xbf16, #tpu.memory_space<vmem>>, vector<8x8x32xbf16>
    %49 = arith.extf %48 : vector<8x8x32xbf16> to vector<8x8x32xf32>
    %50 = vector.extract_strided_slice %46 {offsets = [0, 0], sizes = [8, 8], strides = [1, 1]} : vector<8x16xf32> to vector<8x8xf32>
    %51 = vector.shape_cast %50 : vector<8x8xf32> to vector<8x8x1xf32>
    %52 = vector.broadcast %51 : vector<8x8x1xf32> to vector<8x8x32xf32>
    %53 = arith.mulf %52, %49 : vector<8x8x32xf32>
    %cst_27 = arith.constant dense<0.000000e+00> : vector<8x32xf32>
    %54 = vector.multi_reduction <add>, %53, %cst_27 [1] : vector<8x8x32xf32> to vector<8x32xf32>
    %55 = arith.addf %47, %54 : vector<8x32xf32>
    %c0_28 = arith.constant 0 : index
    %c8_29 = arith.constant 8 : index
    %c0_30 = arith.constant 0 : index
    %56 = vector.load %arg1[%c0_28, %c8_29, %c0_30] : memref<8x16x32xbf16, #tpu.memory_space<vmem>>, vector<8x8x32xbf16>
    %57 = arith.extf %56 : vector<8x8x32xbf16> to vector<8x8x32xf32>
    %58 = vector.extract_strided_slice %46 {offsets = [0, 8], sizes = [8, 8], strides = [1, 1]} : vector<8x16xf32> to vector<8x8xf32>
    %59 = vector.shape_cast %58 : vector<8x8xf32> to vector<8x8x1xf32>
    %60 = vector.broadcast %59 : vector<8x8x1xf32> to vector<8x8x32xf32>
    %61 = arith.mulf %60, %57 : vector<8x8x32xf32>
    %cst_31 = arith.constant dense<0.000000e+00> : vector<8x32xf32>
    %62 = vector.multi_reduction <add>, %61, %cst_31 [1] : vector<8x8x32xf32> to vector<8x32xf32>
    %63 = arith.addf %55, %62 : vector<8x32xf32>
    %64 = arith.truncf %63 : vector<8x32xf32> to vector<8x32xbf16>
    %c0_32 = arith.constant 0 : index
    %c0_33 = arith.constant 0 : index
    %65 = vector.load %arg7[%c0_32, %c0_33] : memref<32x128xbf16, #tpu.memory_space<vmem>>, vector<32x128xbf16>
    %cst_34 = arith.constant dense<0.000000e+00> : vector<8x128xf32>
    %66 = tpu.matmul %64, %65, %cst_34 {dimension_numbers = #tpu.dot_dimension_numbers<[1], [0], [0], [1], [0, 0, 1, 1], [], []>} : vector<8x32xbf16>, vector<32x128xbf16>, vector<8x128xf32> -> vector<8x128xf32>
    %c0_35 = arith.constant 0 : index
    %c0_36 = arith.constant 0 : index
    %67 = vector.load %arg8[%c0_35, %c0_36] : memref<1x128xf32, #tpu.memory_space<vmem>>, vector<1x128xf32>
    %68 = vector.broadcast %67 : vector<1x128xf32> to vector<8x128xf32>
    %69 = arith.addf %66, %68 : vector<8x128xf32>
    %c0_37 = arith.constant 0 : index
    %c0_38 = arith.constant 0 : index
    %70 = vector.load %arg9[%c0_37, %c0_38] : memref<8x128xf32, #tpu.memory_space<vmem>>, vector<8x128xf32>
    tpu.vector_store %arg9[%c0_37, %c0_38], %69 {strides = array<i32>} : memref<8x128xf32, #tpu.memory_space<vmem>>, vector<8x128xf32>,
    return
  }
  func.func @transform_0(%arg0: i32) -> (i32, i32, i32) {
    %c0_i32 = arith.constant 0 : i32
    %c0_i32_0 = arith.constant 0 : i32
    %c0_i32_1 = arith.constant 0 : i32
    return %arg0, %c0_i32, %c0_i32_0 : i32, i32, i32
  }
  func.func @transform_1(%arg0: i32) -> (i32, i32) {
    %c0_i32 = arith.constant 0 : i32
    %c0_i32_0 = arith.constant 0 : i32
    return %arg0, %c0_i32 : i32, i32
  }
  func.func @transform_2(%arg0: i32) -> (i32, i32) {
    %c0_i32 = arith.constant 0 : i32
    %c0_i32_0 = arith.constant 0 : i32
    %c0_i32_1 = arith.constant 0 : i32
    return %c0_i32, %c0_i32_0 : i32, i32
  }
  func.func @transform_3(%arg0: i32) -> (i32, i32) {
    %c0_i32 = arith.constant 0 : i32
    %c0_i32_0 = arith.constant 0 : i32
    %c0_i32_1 = arith.constant 0 : i32
    return %c0_i32, %c0_i32_0 : i32, i32
  }
  func.func @transform_4(%arg0: i32) -> (i32, i32) {
    %c0_i32 = arith.constant 0 : i32
    %c0_i32_0 = arith.constant 0 : i32
    %c0_i32_1 = arith.constant 0 : i32
    return %c0_i32, %c0_i32_0 : i32, i32
  }
  func.func @transform_5(%arg0: i32) -> (i32, i32) {
    %c0_i32 = arith.constant 0 : i32
    %c0_i32_0 = arith.constant 0 : i32
    %c0_i32_1 = arith.constant 0 : i32
    return %c0_i32, %c0_i32_0 : i32, i32
  }
  func.func @transform_6(%arg0: i32) -> (i32, i32) {
    %c0_i32 = arith.constant 0 : i32
    %c0_i32_0 = arith.constant 0 : i32
    %c0_i32_1 = arith.constant 0 : i32
    return %c0_i32, %c0_i32_0 : i32, i32
  }
  func.func @transform_7(%arg0: i32) -> (i32, i32) {
    %c0_i32 = arith.constant 0 : i32
    %c0_i32_0 = arith.constant 0 : i32
    %c0_i32_1 = arith.constant 0 : i32
    return %c0_i32, %c0_i32_0 : i32, i32
  }
  func.func @transform_8(%arg0: i32) -> (i32, i32) {
    %c0_i32 = arith.constant 0 : i32
    %c0_i32_0 = arith.constant 0 : i32
    return %arg0, %c0_i32 : i32, i32
  }
}

</mosaic_0001>

<llo_original>
// kernel: tpu_custom_call.1
$region0: #{tpu_custom_call.1}
  #allocation0 [shape = 'u32[]', space=smem, size = 0x4, offset = 0x4, fixed_abs, tag = 'smem constant byte address 0x4 - core index']
  #allocation1 [shape = 'u32[72,128]{1,0:T(1,128)}', space=vmem, size = 0x9000, scoped, tag = 'internal scratch']
  #allocation2 [shape = 'f32[1,1]{1,0:T(1,128)S(6)}', space=smem, size = 0x200, scoped, tag = 'scoped memory for tpu_custom_call.1']
  %s0 = inlined_call_operand.hbm [shape: bf16[16,16,32], index: 0, kind: input, shape index: {}]
  %s1 = inlined_call_operand.hbm [shape: f32[16,16], index: 1, kind: input, shape index: {}]
  %s2 = inlined_call_operand.hbm [shape: bf16[32,64], index: 2, kind: input, shape index: {}]
  %s3 = inlined_call_operand.vmem [shape: f32[1,64], index: 3, kind: input, shape index: {}]
  %s4 = inlined_call_operand.vmem [shape: f32[1,64], index: 4, kind: input, shape index: {}]
  %s5 = inlined_call_operand.<no memory space> [shape: f32[1,1], index: 5, kind: input, shape index: {}]
  %s6 = inlined_call_operand.hbm [shape: bf16[32,128], index: 6, kind: input, shape index: {}]
  %s7 = inlined_call_operand.vmem [shape: f32[1,128], index: 7, kind: input, shape index: {}]
  %s8 = inlined_call_operand.hbm [shape: f32[16,128], index: 8, kind: output, shape index: {}]
  %s9 = sld [smem:[#allocation0]]
  $region81: #{tpu_custom_call.1} parent=0
    _
  %s11 = ssub.s32 1, %s9
  %s12 = scalar_select 0, %s11, %s9
  %13 = sst [smem:[#allocation2]] %s5
  $region1: #{tpu_custom_call.1} parent=0
    #allocation3 [shape = 'u8[65536]{0}', space=vmem, size = 0x10000, scoped, tag = 'input window, operand 0']
    #allocation4 [shape = 's32[2]{0}', space=sflag, size = 0x8, scoped, tag = 'scoped memory for tpu_custom_call.1']
    #allocation5 [shape = 's32[2]{0}', space=sflag, size = 0x8, scoped, tag = 'scoped memory for tpu_custom_call.1']
    #allocation6 [shape = 'u8[8192]{0}', space=vmem, size = 0x2000, scoped, tag = 'input window, operand 1']
    #allocation7 [shape = 's32[2]{0}', space=sflag, size = 0x8, scoped, tag = 'scoped memory for tpu_custom_call.1']
    #allocation8 [shape = 'u8[8192]{0}', space=vmem, size = 0x2000, scoped, tag = 'input window, operand 2, single buffered']
    #allocation9 [shape = 'u8[8192]{0}', space=vmem, size = 0x2000, scoped, tag = 'input window, operand 6, single buffered']
    #allocation10 [shape = 's32[1]{0}', space=sflag, size = 0x4, scoped, tag = 'scoped memory for tpu_custom_call.1']
    #allocation11 [shape = 'u8[8192]{0}', space=vmem, size = 0x2000, scoped, tag = 'output window, operand 0']
    %14 = vsyncpa [#allocation4], 0
    %s15 = scalar_lea.sflag [#allocation4], 1
    %16 = vsyncpa %s15, 0
    %17 = vsyncpa [#allocation7], 0
    %s18 = scalar_lea.sflag [#allocation7], 1
    %19 = vsyncpa %s18, 0
    %20 = vsyncpa [#allocation10], 0
    %21 = vsyncpa [#allocation5], 0
    %s22 = scalar_lea.sflag [#allocation5], 1
    %23 = vsyncpa %s22, 0
    loop: start=0, step=1, limit=4
    $region2: #{tpu_custom_call.1} parent=1 // loop_pre_header
      _
    $region3: #{tpu_custom_call.1} parent=1 // loop_header
      %s25 = sphi 0, %s29
      %p26 = scmp.ge.s32.totalorder %s25, 4
      %s35 = sphi 0, %s37
      %s38 = sphi 0, %s35
      %s39 = sphi 0, %s38
      %s55 = sphi 0, %s39
      %s61 = sphi 0, %s63
      %s64 = sphi 0, %s61
      %s65 = sphi 0, %s64
      %s81 = sphi 0, %s65
      %s85 = sphi 0, %s85
      %s87 = sphi 0, %s85
      %s88 = sphi 0, %s87
      %s102 = sphi 0, %s88
      %s106 = sphi 0, %s106
      %s108 = sphi 0, %s106
      %s109 = sphi 0, %s108
      %s123 = sphi 0, %s109
      %s127 = sphi 0, %s127
      %s129 = sphi 0, %s127
      %s130 = sphi 0, %s129
      %s144 = sphi 0, %s130
      %s148 = sphi 0, %s148
      %s150 = sphi 0, %s148
      %s151 = sphi 0, %s150
      %s165 = sphi 0, %s151
      %s169 = sphi 0, %s169
      %s171 = sphi 0, %s169
      %s172 = sphi 0, %s171
      %s186 = sphi 0, %s172
      %s190 = sphi 0, %s190
      %s192 = sphi 0, %s190
      %s193 = sphi 0, %s192
      %s207 = sphi 0, %s193
      %s213 = sphi 0, %s215
      %s216 = sphi 0, %s213
      %s217 = sphi 0, %s216
      %s233 = sphi 0, %s217
    $region4: #{tpu_custom_call.1} parent=1 // loop_header_branch
      %28 = sbr.rel (%p26) target = $region8
    $region5: #{tpu_custom_call.1} parent=1 // loop_body
      %s30 = ssub.s32 %s25, 1
      %s31 = ssub.s32 %s25, 2
      %s32 = sadd.s32 %s25, 1
      %s33 = ssub.s32 %s25, %s32
      %p34 = scmp.eq.s32.totalorder %s33, 0
      %s36 = sadd.s32 %s35, 1
      %s37 = scalar_select %p34, %s35, %s36
      %p40 = pneg %p34
      %p41 = scmp.eq.s32.totalorder %s25, 1
      %p42 = por %p40, %p41
      %p43 = scmp.ne.s32.totalorder %s35, %s38
      %p44 = scmp.eq.s32.totalorder %s25, 0
      %p45 = por %p43, %p44
      %p46 = scmp.ne.s32.totalorder %s35, %s38
      %p47 = scmp.eq.s32.totalorder %s30, 1
      %p48 = por %p46, %p47
      %p49 = scmp.ne.s32.totalorder %s38, %s39
      %p50 = scmp.eq.s32.totalorder %s30, 0
      %p51 = por %p49, %p50
      %p52 = scmp.ne.s32.totalorder %s38, %s39
      %p53 = scmp.eq.s32.totalorder %s31, 1
      %p54 = por %p52, %p53
      %p56 = scmp.ne.s32.totalorder %s39, %s55
      %p57 = scmp.eq.s32.totalorder %s31, 0
      %p58 = por %p56, %p57
      %s59 = ssub.s32 %s25, %s32
      %p60 = scmp.eq.s32.totalorder %s59, 0
      %s62 = sadd.s32 %s61, 1
      %s63 = scalar_select %p60, %s61, %s62
      %p66 = pneg %p60
      %p67 = scmp.eq.s32.totalorder %s25, 1
      %p68 = por %p66, %p67
      %p69 = scmp.ne.s32.totalorder %s61, %s64
      %p70 = scmp.eq.s32.totalorder %s25, 0
      %p71 = por %p69, %p70
      %p72 = scmp.ne.s32.totalorder %s61, %s64
      %p73 = scmp.eq.s32.totalorder %s30, 1
      %p74 = por %p72, %p73
      %p75 = scmp.ne.s32.totalorder %s64, %s65
      %p76 = scmp.eq.s32.totalorder %s30, 0
      %p77 = por %p75, %p76
      %p78 = scmp.ne.s32.totalorder %s64, %s65
      %p79 = scmp.eq.s32.totalorder %s31, 1
      %p80 = por %p78, %p79
      %p82 = scmp.ne.s32.totalorder %s65, %s81
      %p83 = scmp.eq.s32.totalorder %s31, 0
      %p84 = por %p82, %p83
      %s86 = sadd.s32 %s85, 1
      %p89 = scmp.eq.s32.totalorder %s25, 1
      %p90 = scmp.ne.s32.totalorder %s85, %s87
      %p91 = scmp.eq.s32.totalorder %s25, 0
      %p92 = por %p90, %p91
      %p93 = scmp.ne.s32.totalorder %s85, %s87
      %p94 = scmp.eq.s32.totalorder %s30, 1
      %p95 = por %p93, %p94
      %p96 = scmp.ne.s32.totalorder %s87, %s88
      %p97 = scmp.eq.s32.totalorder %s30, 0
      %p98 = por %p96, %p97
      %p99 = scmp.ne.s32.totalorder %s87, %s88
      %p100 = scmp.eq.s32.totalorder %s31, 1
      %p101 = por %p99, %p100
      %p103 = scmp.ne.s32.totalorder %s88, %s102
      %p104 = scmp.eq.s32.totalorder %s31, 0
      %p105 = por %p103, %p104
      %s107 = sadd.s32 %s106, 1
      %p110 = scmp.eq.s32.totalorder %s25, 1
      %p111 = scmp.ne.s32.totalorder %s106, %s108
      %p112 = scmp.eq.s32.totalorder %s25, 0
      %p113 = por %p111, %p112
      %p114 = scmp.ne.s32.totalorder %s106, %s108
      %p115 = scmp.eq.s32.totalorder %s30, 1
      %p116 = por %p114, %p115
      %p117 = scmp.ne.s32.totalorder %s108, %s109
      %p118 = scmp.eq.s32.totalorder %s30, 0
      %p119 = por %p117, %p118
      %p120 = scmp.ne.s32.totalorder %s108, %s109
      %p121 = scmp.eq.s32.totalorder %s31, 1
      %p122 = por %p120, %p121
      %p124 = scmp.ne.s32.totalorder %s109, %s123
      %p125 = scmp.eq.s32.totalorder %s31, 0
      %p126 = por %p124, %p125
      %s128 = sadd.s32 %s127, 1
      %p131 = scmp.eq.s32.totalorder %s25, 1
      %p132 = scmp.ne.s32.totalorder %s127, %s129
      %p133 = scmp.eq.s32.totalorder %s25, 0
      %p134 = por %p132, %p133
      %p135 = scmp.ne.s32.totalorder %s127, %s129
      %p136 = scmp.eq.s32.totalorder %s30, 1
      %p137 = por %p135, %p136
      %p138 = scmp.ne.s32.totalorder %s129, %s130
      %p139 = scmp.eq.s32.totalorder %s30, 0
      %p140 = por %p138, %p139
      %p141 = scmp.ne.s32.totalorder %s129, %s130
      %p142 = scmp.eq.s32.totalorder %s31, 1
      %p143 = por %p141, %p142
      %p145 = scmp.ne.s32.totalorder %s130, %s144
      %p146 = scmp.eq.s32.totalorder %s31, 0
      %p147 = por %p145, %p146
      %s149 = sadd.s32 %s148, 1
      %p152 = scmp.eq.s32.totalorder %s25, 1
      %p153 = scmp.ne.s32.totalorder %s148, %s150
      %p154 = scmp.eq.s32.totalorder %s25, 0
      %p155 = por %p153, %p154
      %p156 = scmp.ne.s32.totalorder %s148, %s150
      %p157 = scmp.eq.s32.totalorder %s30, 1
      %p158 = por %p156, %p157
      %p159 = scmp.ne.s32.totalorder %s150, %s151
      %p160 = scmp.eq.s32.totalorder %s30, 0
      %p161 = por %p159, %p160
      %p162 = scmp.ne.s32.totalorder %s150, %s151
      %p163 = scmp.eq.s32.totalorder %s31, 1
      %p164 = por %p162, %p163
      %p166 = scmp.ne.s32.totalorder %s151, %s165
      %p167 = scmp.eq.s32.totalorder %s31, 0
      %p168 = por %p166, %p167
      %s170 = sadd.s32 %s169, 1
      %p173 = scmp.eq.s32.totalorder %s25, 1
      %p174 = scmp.ne.s32.totalorder %s169, %s171
      %p175 = scmp.eq.s32.totalorder %s25, 0
      %p176 = por %p174, %p175
      %p177 = scmp.ne.s32.totalorder %s169, %s171
      %p178 = scmp.eq.s32.totalorder %s30, 1
      %p179 = por %p177, %p178
      %p180 = scmp.ne.s32.totalorder %s171, %s172
      %p181 = scmp.eq.s32.totalorder %s30, 0
      %p182 = por %p180, %p181
      %p183 = scmp.ne.s32.totalorder %s171, %s172
      %p184 = scmp.eq.s32.totalorder %s31, 1
      %p185 = por %p183, %p184
      %p187 = scmp.ne.s32.totalorder %s172, %s186
      %p188 = scmp.eq.s32.totalorder %s31, 0
      %p189 = por %p187, %p188
      %s191 = sadd.s32 %s190, 1
      %p194 = scmp.eq.s32.totalorder %s25, 1
      %p195 = scmp.ne.s32.totalorder %s190, %s192
      %p196 = scmp.eq.s32.totalorder %s25, 0
      %p197 = por %p195, %p196
      %p198 = scmp.ne.s32.totalorder %s190, %s192
      %p199 = scmp.eq.s32.totalorder %s30, 1
      %p200 = por %p198, %p199
      %p201 = scmp.ne.s32.totalorder %s192, %s193
      %p202 = scmp.eq.s32.totalorder %s30, 0
      %p203 = por %p201, %p202
      %p204 = scmp.ne.s32.totalorder %s192, %s193
      %p205 = scmp.eq.s32.totalorder %s31, 1
      %p206 = por %p204, %p205
      %p208 = scmp.ne.s32.totalorder %s193, %s207
      %p209 = scmp.eq.s32.totalorder %s31, 0
      %p210 = por %p208, %p209
      %s211 = ssub.s32 %s25, %s32
      %p212 = scmp.eq.s32.totalorder %s211, 0
      %s214 = sadd.s32 %s213, 1
      %s215 = scalar_select %p212, %s213, %s214
      %p218 = pneg %p212
      %p219 = scmp.eq.s32.totalorder %s25, 1
      %p220 = por %p218, %p219
      %p221 = scmp.ne.s32.totalorder %s213, %s216
      %p222 = scmp.eq.s32.totalorder %s25, 0
      %p223 = por %p221, %p222
      %p224 = scmp.ne.s32.totalorder %s213, %s216
      %p225 = scmp.eq.s32.totalorder %s30, 1
      %p226 = por %p224, %p225
      %p227 = scmp.ne.s32.totalorder %s216, %s217
      %p228 = scmp.eq.s32.totalorder %s30, 0
      %p229 = por %p227, %p228
      %p230 = scmp.ne.s32.totalorder %s216, %s217
      %p231 = scmp.eq.s32.totalorder %s31, 1
      %p232 = por %p230, %p231
      %p234 = scmp.ne.s32.totalorder %s217, %s233
      %p235 = scmp.eq.s32.totalorder %s31, 0
      %p236 = por %p234, %p235
      %p237 = scmp.le.s32.totalorder 1, %s25
      %p238 = scmp.lt.s32.totalorder %s25, 3
      %p239 = pnand %p237, %p238
      %p240 = pneg %p239
      // Predicated region
      $region9: #{tpu_custom_call.1} parent=5 // pred_check
        _
      $region10: #{tpu_custom_call.1} parent=5 // pred_check_branch
        %242 = sbr.rel (%p239) target = $region12
      $region11: #{tpu_custom_call.1} parent=5 // pred_region
        %s243 = ssub.s32 %s25, 1
        // Predicated region
        $region13: #{tpu_custom_call.1} parent=11 // pred_check
          %p244 = pneg %p98
        $region14: #{tpu_custom_call.1} parent=11 // pred_check_branch
          %246 = sbr.rel (%p244) target = $region16
        $region15: #{tpu_custom_call.1} parent=11 // pred_region
          %248 = vsyncadd [#allocation7], 0
          %s249 = sshll.u32 %s2, 4
          %s250 = int_to_ptr.hbm [resolvable:$true] %s249
          %s251 = sshll.u32 [#allocation8], 4
          %s252 = int_to_ptr.vmem [resolvable:$true] %s251
          %257 = dma.hbm_to_vmem [thread:$0]  %s250, 256, %s252, [#allocation7], 64, 64, 4
        $region16: #{tpu_custom_call.1} parent=11 // pred_fallthru
          _
        // Predicated region
        $region17: #{tpu_custom_call.1} parent=11 // pred_check
          %p258 = pneg %p119
        $region18: #{tpu_custom_call.1} parent=11 // pred_check_branch
          %260 = sbr.rel (%p258) target = $region20
        $region19: #{tpu_custom_call.1} parent=11 // pred_region
          _
        $region20: #{tpu_custom_call.1} parent=11 // pred_fallthru
          _
        // Predicated region
        $region21: #{tpu_custom_call.1} parent=11 // pred_check
          %p261 = pneg %p140
        $region22: #{tpu_custom_call.1} parent=11 // pred_check_branch
          %263 = sbr.rel (%p261) target = $region24
        $region23: #{tpu_custom_call.1} parent=11 // pred_region
          _
        $region24: #{tpu_custom_call.1} parent=11 // pred_fallthru
          _
        // Predicated region
        $region25: #{tpu_custom_call.1} parent=11 // pred_check
          %p264 = pneg %p161
        $region26: #{tpu_custom_call.1} parent=11 // pred_check_branch
          %266 = sbr.rel (%p264) target = $region28
        $region27: #{tpu_custom_call.1} parent=11 // pred_region
          _
        $region28: #{tpu_custom_call.1} parent=11 // pred_fallthru
          _
        // Predicated region
        $region29: #{tpu_custom_call.1} parent=11 // pred_check
          %p267 = pneg %p182
        $region30: #{tpu_custom_call.1} parent=11 // pred_check_branch
          %269 = sbr.rel (%p267) target = $region32
        $region31: #{tpu_custom_call.1} parent=11 // pred_region
          %271 = vsyncadd [#allocation10], 0
          %s272 = sshll.u32 %s6, 4
          %s273 = int_to_ptr.hbm [resolvable:$true] %s272
          %s274 = sshll.u32 [#allocation9], 4
          %s275 = int_to_ptr.vmem [resolvable:$true] %s274
          %280 = dma.hbm_to_vmem [thread:$0]  %s273, 256, %s275, [#allocation10], 64, 64, 4
        $region32: #{tpu_custom_call.1} parent=11 // pred_fallthru
          _
        // Predicated region
        $region33: #{tpu_custom_call.1} parent=11 // pred_check
          %p281 = pneg %p203
        $region34: #{tpu_custom_call.1} parent=11 // pred_check_branch
          %283 = sbr.rel (%p281) target = $region36
        $region35: #{tpu_custom_call.1} parent=11 // pred_region
          _
        $region36: #{tpu_custom_call.1} parent=11 // pred_fallthru
          _
      $region12: #{tpu_custom_call.1} parent=5 // pred_fallthru
        _
      %p284 = scmp.lt.s32.totalorder %s25, 2
      // Predicated region
      $region37: #{tpu_custom_call.1} parent=5 // pred_check
        %p285 = pneg %p284
      $region38: #{tpu_custom_call.1} parent=5 // pred_check_branch
        %287 = sbr.rel (%p285) target = $region40
      $region39: #{tpu_custom_call.1} parent=5 // pred_region
        // Predicated region
        $region41: #{tpu_custom_call.1} parent=39 // pred_check
          %p288 = pneg %p45
        $region42: #{tpu_custom_call.1} parent=39 // pred_check_branch
          %290 = sbr.rel (%p288) target = $region44
        $region43: #{tpu_custom_call.1} parent=39 // pred_region
          %s291 = sand.u32 %s35, 1
          %s292 = scalar_lea.sflag [#allocation4], %s291
          %s293 = sand.u32 %s35, 1
          %s294 = smul.addr %s293, 64
          %s295 = scalar_lea.vmem [#allocation3], %s294
          %s296 = smul.u32 8, %s25
          %298 = vsyncadd %s292, 0
          %s299 = smul.addr %s296, 2
          %s300 = smul.addr %s299, 4
          %s301 = scalar_lea.hbm %s0, %s300
          %s302 = sshll.u32 %s301, 4
          %s303 = int_to_ptr.hbm [resolvable:$true] %s302
          %s304 = sshll.u32 %s295, 4
          %s305 = int_to_ptr.vmem [resolvable:$true] %s304
          %310 = dma.hbm_to_vmem [thread:$0]  %s303, 1024, %s305, %s292, 64, 64, 4
        $region44: #{tpu_custom_call.1} parent=39 // pred_fallthru
          _
        // Predicated region
        $region45: #{tpu_custom_call.1} parent=39 // pred_check
          %p311 = pneg %p71
        $region46: #{tpu_custom_call.1} parent=39 // pred_check_branch
          %313 = sbr.rel (%p311) target = $region48
        $region47: #{tpu_custom_call.1} parent=39 // pred_region
          %s314 = sand.u32 %s25, 1
          %s315 = scalar_lea.sflag [#allocation7], %s314
          %s316 = sand.u32 %s61, 1
          %s317 = smul.addr %s316, 8
          %s318 = scalar_lea.vmem [#allocation6], %s317
          %320 = vsyncadd %s315, 0
          %s321 = smul.addr %s25, 8
          %s322 = scalar_lea.hbm %s1, %s321
          %s324 = sshll.u32 %s322, 4
          %s325 = int_to_ptr.hbm [resolvable:$true] %s324
          %s326 = sshll.u32 %s318, 4
          %s327 = int_to_ptr.vmem [resolvable:$true] %s326
          %329 = dma.hbm_to_vmem [thread:$0]  %s325, 128, %s327, %s315
        $region48: #{tpu_custom_call.1} parent=39 // pred_fallthru
          _
      $region40: #{tpu_custom_call.1} parent=5 // pred_fallthru
        _
      %p330 = scmp.le.s32.totalorder 1, %s25
      %p331 = scmp.lt.s32.totalorder %s25, 3
      %p332 = pnand %p330, %p331
      %p333 = pneg %p332
      // Predicated region
      $region49: #{tpu_custom_call.1} parent=5 // pred_check
        _
      $region50: #{tpu_custom_call.1} parent=5 // pred_check_branch
        %335 = sbr.rel (%p332) target = $region52
      $region51: #{tpu_custom_call.1} parent=5 // pred_region
        %s336 = ssub.s32 %s25, 1
        %s337 = sand.u32 %s38, 1
        %s338 = scalar_lea.sflag [#allocation4], %s337
        %s339 = sand.u32 %s38, 1
        %s340 = smul.addr %s339, 64
        %s341 = scalar_lea.vmem [#allocation3], %s340
        // Predicated region
        $region53: #{tpu_custom_call.1} parent=51 // pred_check
          %p342 = pneg %p51
        $region54: #{tpu_custom_call.1} parent=51 // pred_check_branch
          %344 = sbr.rel (%p342) target = $region56
        $region55: #{tpu_custom_call.1} parent=51 // pred_region
          %346 = dma.done %s338, 1024
        $region56: #{tpu_custom_call.1} parent=51 // pred_fallthru
          _
        %s347 = sand.u32 %s30, 1
        %s348 = scalar_lea.sflag [#allocation7], %s347
        %s349 = sand.u32 %s64, 1
        %s350 = smul.addr %s349, 8
        %s351 = scalar_lea.vmem [#allocation6], %s350
        // Predicated region
        $region57: #{tpu_custom_call.1} parent=51 // pred_check
          %p352 = pneg %p77
        $region58: #{tpu_custom_call.1} parent=51 // pred_check_branch
          %354 = sbr.rel (%p352) target = $region60
        $region59: #{tpu_custom_call.1} parent=51 // pred_region
          %356 = dma.done %s348, 128
        $region60: #{tpu_custom_call.1} parent=51 // pred_fallthru
          _
        // Predicated region
        $region61: #{tpu_custom_call.1} parent=51 // pred_check
          %p357 = pneg %p98
        $region62: #{tpu_custom_call.1} parent=51 // pred_check_branch
          %359 = sbr.rel (%p357) target = $region64
        $region63: #{tpu_custom_call.1} parent=51 // pred_region
          %361 = dma.done [#allocation7], 256
        $region64: #{tpu_custom_call.1} parent=51 // pred_fallthru
          _
        // Predicated region
        $region65: #{tpu_custom_call.1} parent=51 // pred_check
          %p362 = pneg %p182
        $region66: #{tpu_custom_call.1} parent=51 // pred_check_branch
          %364 = sbr.rel (%p362) target = $region68
        $region67: #{tpu_custom_call.1} parent=51 // pred_region
          %366 = dma.done [#allocation10], 256
        $region68: #{tpu_custom_call.1} parent=51 // pred_fallthru
          _
        %s367 = sand.u32 %s38, 1
        %s368 = scalar_lea.sflag [#allocation4], %s367
        %s369 = sand.u32 %s38, 1
        %s370 = smul.addr %s369, 64
        %s371 = scalar_lea.vmem [#allocation3], %s370
        %p372 = pneg %p51
        %p373 = pneg %p48
        %s374 = sand.u32 %s30, 1
        %s375 = scalar_lea.sflag [#allocation7], %s374
        %s376 = sand.u32 %s64, 1
        %s377 = smul.addr %s376, 8
        %s378 = scalar_lea.vmem [#allocation6], %s377
        %p379 = pneg %p77
        %p380 = pneg %p74
        %p381 = pneg %p98
        %p382 = pneg %p95
        %p383 = pneg %p119
        %p384 = pneg %p116
        %p385 = pneg %p140
        %p386 = pneg %p137
        %p387 = pneg %p161
        %p388 = pneg %p158
        %p389 = pneg %p182
        %p390 = pneg %p179
        %p391 = pneg %p203
        %p392 = pneg %p200
        %p393 = pneg %p229
        %p394 = pneg %p226
        %s395 = sand.u32 %s216, 1
        %s396 = scalar_lea.sflag [#allocation5], %s395
        %s397 = sand.u32 %s216, 1
        %s398 = smul.addr %s397, 8
        %s399 = scalar_lea.vmem [#allocation11], %s398
        %s400 = smul.u32 8, %s30
        %v402 = vld [vmem:[#allocation8] sm:$0xf]
        %v403 = vld [vmem:[#allocation8 + $0x4] sm:$0xf]
        %v404 = vld [vmem:[#allocation8 + $0x8] sm:$0xf]
        %v405 = vld [vmem:[#allocation8 + $0xc] sm:$0xf]
        %v406 = vld [vmem:[%s3] sm:$0x1]
        %v407 = vld [vmem:[%s4] sm:$0x1]
        %s408 = sld [smem:[#allocation2]]
        %v409 = vld [vmem:[%s341] sm:$0xf]
        %v410 = vld [vmem:[%s341 + $0x8] sm:$0xf]
        %v411 = vld [vmem:[%s341 + $0x10] sm:$0xf]
        %v412 = vld [vmem:[%s341 + $0x18] sm:$0xf]
        %v413 = vld [vmem:[%s341 + $0x20] sm:$0xf]
        %v414 = vld [vmem:[%s341 + $0x28] sm:$0xf]
        %v415 = vld [vmem:[%s341 + $0x30] sm:$0xf]
        %v416 = vld [vmem:[%s341 + $0x38] sm:$0xf]
        %v418 = vperm.slane %v406, 0
        %v428 = vunpack.c.l.b16 %v409
        %v429 = vunpack.c.l.b16 %v410
        %v430 = vunpack.c.l.b16 %v411
        %v431 = vunpack.c.l.b16 %v412
        %v432 = vunpack.c.l.b16 %v413
        %v433 = vunpack.c.l.b16 %v414
        %v434 = vunpack.c.l.b16 %v415
        %v435 = vunpack.c.l.b16 %v416
        %v436 = vpack.c.b16 %v429, %v428
        %v437 = vpack.c.b16 %v431, %v430
        %v438 = vpack.c.b16 %v433, %v432
        %v439 = vpack.c.b16 %v435, %v434
        %v444 = vunpack.c.l.b16 %v402
        %v445 = vunpack.c.l.b16 %v403
        %v446 = vunpack.c.l.b16 %v404
        %v447 = vunpack.c.l.b16 %v405
        %v448 = vpack.c.b16 %v445, %v444
        %v449 = vpack.c.b16 %v447, %v446
        %vm452 = vcmask 261120
        %v454 = vsel %vm452, %v436, 0
        %v457 = vsel %vm452, %v437, 0
        %v460 = vsel %vm452, %v438, 0
        %v463 = vsel %vm452, %v439, 0
        %465 = vmatpush.bf16.msra.mxu0 0
        %466 = vmatpush.bf16.msra.mxu0 0
        %467 = vmatpush.bf16.msra.mxu0 0
        %468 = vmatpush.bf16.msra.mxu0 0
        %469 = vmatpush.bf16.msra.mxu0 0
        %470 = vmatpush.bf16.msra.mxu0 0
        %471 = vmatpush.bf16.msra.mxu0 %v449
        %472 = vmatpush.bf16.msra.mxu0 %v448
        %473 = vmatmul.bf16.gmra.mxu0 %v454
        %v474 = vpop.f32.mrf.mxu0
        %v475 = vadd.f32 %v418, %v474
        %v476 = vpop.f32.mrf.mxu0
        %v477 = vadd.f32 %v418, %v476
        %478 = vmatmul.bf16.gmra.mxu0 %v457
        %v479 = vpop.f32.mrf.mxu0
        %v480 = vadd.f32 %v418, %v479
        %v481 = vpop.f32.mrf.mxu0
        %v482 = vadd.f32 %v418, %v481
        %483 = vmatmul.bf16.gmra.mxu0 %v460
        %v484 = vpop.f32.mrf.mxu0
        %v485 = vadd.f32 %v418, %v484
        %v486 = vpop.f32.mrf.mxu0
        %v487 = vadd.f32 %v418, %v486
        %488 = vmatmul.bf16.gmra.mxu0 %v463
        %v489 = vpop.f32.mrf.mxu0
        %v490 = vadd.f32 %v418, %v489
        %v491 = vpop.f32.mrf.mxu0
        %v492 = vadd.f32 %v418, %v491
        %493 = vdwg.mxu0
        %v494 = vmax.f32 %v475, 0.0
        %v495 = vmax.f32 %v477, 0.0
        %v496 = vmax.f32 %v480, 0.0
        %v497 = vmax.f32 %v482, 0.0
        %v498 = vmax.f32 %v485, 0.0
        %v499 = vmax.f32 %v487, 0.0
        %v500 = vmax.f32 %v490, 0.0
        %v501 = vmax.f32 %v492, 0.0
        %v503 = vperm.slane %v407, 0
        %v505 = vmul.f32 %v494, %v503
        %v506 = vmul.f32 %v495, %v503
        %v507 = vmul.f32 %v496, %v503
        %v508 = vmul.f32 %v497, %v503
        %v509 = vmul.f32 %v498, %v503
        %v510 = vmul.f32 %v499, %v503
        %v511 = vmul.f32 %v500, %v503
        %v512 = vmul.f32 %v501, %v503
        %vm513 = vcmask 523264
        %v514 = vsel %vm513, %v505, 0.0
        %515 = vadd.xlane.f32.xlu0 %v514
        %v516 = vpop.xlane.xlu0 %515
        %v517 = vsel %vm513, %v506, 0.0
        %518 = vadd.xlane.f32.xlu0 %v517
        %v519 = vpop.xlane.xlu0 %518
        %v520 = vsel %vm513, %v507, 0.0
        %521 = vadd.xlane.f32.xlu0 %v520
        %v522 = vpop.xlane.xlu0 %521
        %v523 = vsel %vm513, %v508, 0.0
        %524 = vadd.xlane.f32.xlu0 %v523
        %v525 = vpop.xlane.xlu0 %524
        %v526 = vsel %vm513, %v509, 0.0
        %527 = vadd.xlane.f32.xlu0 %v526
        %v528 = vpop.xlane.xlu0 %527
        %v529 = vsel %vm513, %v510, 0.0
        %530 = vadd.xlane.f32.xlu0 %v529
        %v531 = vpop.xlane.xlu0 %530
        %v532 = vsel %vm513, %v511, 0.0
        %533 = vadd.xlane.f32.xlu0 %v532
        %v534 = vpop.xlane.xlu0 %533
        %v535 = vsel %vm513, %v512, 0.0
        %536 = vadd.xlane.f32.xlu0 %v535
        %v537 = vpop.xlane.xlu0 %536
        %v538 = vstv %s408
        %v539 = vadd.f32 %v516, %v538
        %v540 = vadd.f32 %v519, %v538
        %v541 = vadd.f32 %v522, %v538
        %v542 = vadd.f32 %v525, %v538
        %v543 = vadd.f32 %v528, %v538
        %v544 = vadd.f32 %v531, %v538
        %v545 = vadd.f32 %v534, %v538
        %v546 = vadd.f32 %v537, %v538
        %v547 = vld [vmem:[%s341 + $0x4] sm:$0xf]
        %v548 = vld [vmem:[%s341 + $0xc] sm:$0xf]
        %v549 = vld [vmem:[%s341 + $0x14] sm:$0xf]
        %v550 = vld [vmem:[%s341 + $0x1c] sm:$0xf]
        %v551 = vld [vmem:[%s341 + $0x24] sm:$0xf]
        %v552 = vld [vmem:[%s341 + $0x2c] sm:$0xf]
        %v553 = vld [vmem:[%s341 + $0x34] sm:$0xf]
        %v554 = vld [vmem:[%s341 + $0x3c] sm:$0xf]
        %v563 = vunpack.c.l.b16 %v547
        %v564 = vunpack.c.l.b16 %v548
        %v565 = vunpack.c.l.b16 %v549
        %v566 = vunpack.c.l.b16 %v550
        %v567 = vunpack.c.l.b16 %v551
        %v568 = vunpack.c.l.b16 %v552
        %v569 = vunpack.c.l.b16 %v553
        %v570 = vunpack.c.l.b16 %v554
        %v571 = vpack.c.b16 %v564, %v563
        %v572 = vpack.c.b16 %v566, %v565
        %v573 = vpack.c.b16 %v568, %v567
        %v574 = vpack.c.b16 %v570, %v569
        %v576 = vsel %vm452, %v571, 0
        %v579 = vsel %vm452, %v572, 0
        %v582 = vsel %vm452, %v573, 0
        %v585 = vsel %vm452, %v574, 0
        %587 = vmatpush.bf16.msra.mxu0 0
        %588 = vmatpush.bf16.msra.mxu0 0
        %589 = vmatpush.bf16.msra.mxu0 0
        %590 = vmatpush.bf16.msra.mxu0 0
        %591 = vmatpush.bf16.msra.mxu0 0
        %592 = vmatpush.bf16.msra.mxu0 0
        %593 = vmatpush.bf16.msra.mxu0 %v449
        %594 = vmatpush.bf16.msra.mxu0 %v448
        %595 = vmatmul.bf16.gmra.mxu0 %v576
        %v596 = vpop.f32.mrf.mxu0
        %v597 = vadd.f32 %v418, %v596
        %v598 = vpop.f32.mrf.mxu0
        %v599 = vadd.f32 %v418, %v598
        %600 = vmatmul.bf16.gmra.mxu0 %v579
        %v601 = vpop.f32.mrf.mxu0
        %v602 = vadd.f32 %v418, %v601
        %v603 = vpop.f32.mrf.mxu0
        %v604 = vadd.f32 %v418, %v603
        %605 = vmatmul.bf16.gmra.mxu0 %v582
        %v606 = vpop.f32.mrf.mxu0
        %v607 = vadd.f32 %v418, %v606
        %v608 = vpop.f32.mrf.mxu0
        %v609 = vadd.f32 %v418, %v608
        %610 = vmatmul.bf16.gmra.mxu0 %v585
        %v611 = vpop.f32.mrf.mxu0
        %v612 = vadd.f32 %v418, %v611
        %v613 = vpop.f32.mrf.mxu0
        %v614 = vadd.f32 %v418, %v613
        %615 = vdwg.mxu0
        %v616 = vmax.f32 %v597, 0.0
        %v617 = vmax.f32 %v599, 0.0
        %v618 = vmax.f32 %v602, 0.0
        %v619 = vmax.f32 %v604, 0.0
        %v620 = vmax.f32 %v607, 0.0
        %v621 = vmax.f32 %v609, 0.0
        %v622 = vmax.f32 %v612, 0.0
        %v623 = vmax.f32 %v614, 0.0
        %v624 = vmul.f32 %v616, %v503
        %v625 = vmul.f32 %v617, %v503
        %v626 = vmul.f32 %v618, %v503
        %v627 = vmul.f32 %v619, %v503
        %v628 = vmul.f32 %v620, %v503
        %v629 = vmul.f32 %v621, %v503
        %v630 = vmul.f32 %v622, %v503
        %v631 = vmul.f32 %v623, %v503
        %v632 = vsel %vm513, %v624, 0.0
        %633 = vadd.xlane.f32.xlu0 %v632
        %v634 = vpop.xlane.xlu0 %633
        %v635 = vsel %vm513, %v625, 0.0
        %636 = vadd.xlane.f32.xlu0 %v635
        %v637 = vpop.xlane.xlu0 %636
        %v638 = vsel %vm513, %v626, 0.0
        %639 = vadd.xlane.f32.xlu0 %v638
        %v640 = vpop.xlane.xlu0 %639
        %v641 = vsel %vm513, %v627, 0.0
        %642 = vadd.xlane.f32.xlu0 %v641
        %v643 = vpop.xlane.xlu0 %642
        %v644 = vsel %vm513, %v628, 0.0
        %645 = vadd.xlane.f32.xlu0 %v644
        %v646 = vpop.xlane.xlu0 %645
        %v647 = vsel %vm513, %v629, 0.0
        %648 = vadd.xlane.f32.xlu0 %v647
        %v649 = vpop.xlane.xlu0 %648
        %v650 = vsel %vm513, %v630, 0.0
        %651 = vadd.xlane.f32.xlu0 %v650
        %v652 = vpop.xlane.xlu0 %651
        %v653 = vsel %vm513, %v631, 0.0
        %654 = vadd.xlane.f32.xlu0 %v653
        %v655 = vpop.xlane.xlu0 %654
        %v656 = vadd.f32 %v634, %v538
        %v657 = vadd.f32 %v637, %v538
        %v658 = vadd.f32 %v640, %v538
        %v659 = vadd.f32 %v643, %v538
        %v660 = vadd.f32 %v646, %v538
        %v661 = vadd.f32 %v649, %v538
        %v662 = vadd.f32 %v652, %v538
        %v663 = vadd.f32 %v655, %v538
        %v672 = vlaneseq
        %v673 = vand.u32 %v672, 127
        %v674 = vperm.slane %v539, %v673
        %v675 = vperm.slane %v540, %v673
        %v676 = vperm.slane %v541, %v673
        %v677 = vperm.slane %v542, %v673
        %v678 = vperm.slane %v543, %v673
        %v679 = vperm.slane %v544, %v673
        %v680 = vperm.slane %v545, %v673
        %v681 = vperm.slane %v546, %v673
        %vm682 = vcmask 1041409
        %v683 = vsel %vm682, %v675, %v674
        %vm684 = vcmask 1042434
        %v685 = vsel %vm684, %v676, %v683
        %vm686 = vcmask 1043459
        %v687 = vsel %vm686, %v677, %v685
        %vm688 = vcmask 1044484
        %v689 = vsel %vm688, %v678, %v687
        %vm690 = vcmask 1045509
        %v691 = vsel %vm690, %v679, %v689
        %vm692 = vcmask 1046534
        %v693 = vsel %vm692, %v680, %v691
        %vm694 = vcmask 1047559
        %v695 = vsel %vm694, %v681, %v693
        %v705 = vadd.s32 %v673, 4294967288
        %v706 = vperm.slane %v656, %v705
        %v707 = vperm.slane %v657, %v705
        %v708 = vperm.slane %v658, %v705
        %v709 = vperm.slane %v659, %v705
        %v710 = vperm.slane %v660, %v705
        %v711 = vperm.slane %v661, %v705
        %v712 = vperm.slane %v662, %v705
        %v713 = vperm.slane %v663, %v705
        %v714 = vsel %vm682, %v707, %v706
        %v715 = vsel %vm684, %v708, %v714
        %v716 = vsel %vm686, %v709, %v715
        %v717 = vsel %vm688, %v710, %v716
        %v718 = vsel %vm690, %v711, %v717
        %v719 = vsel %vm692, %v712, %v718
        %v720 = vsel %vm694, %v713, %v719
        %vm722 = vcmask 64512
        %v723 = vsel %vm722, %v695, %v720
        %v724 = vld [vmem:[%s351] sm:$0xff]
        %vm725 = vcmp.gt.f32.partialorder %v724, 0.0
        %v726 = vsel %vm725, -1e+09, %v723
        %vm727 = vcmask 130048
        %v728 = vsel %vm727, %v726, -inf
        %729 = vmax.xlane.f32.xlu0 %v728
        %v730 = vpop.xlane.xlu0 %729
        %v731 = vsub.f32 %v726, %v730
        %v732 = vmul.f32 %v731, 1.442695
        %v733 = vpow.pop %v732
        %v734 = vsel %vm727, %v733, 0.0
        %735 = vadd.xlane.f32.xlu0 %v734
        %v736 = vpop.xlane.xlu0 %735
        %v737 = vrcp.pop %v736
        %v738 = vmul.f32 %v736, %v737
        %v739 = vsub.f32 1.0, %v738
        %v740 = vmul.f32 %v737, %v739
        %v741 = vadd.f32 %v737, %v740
        %vm742 = vweird.f32 %v736
        %vm743 = vweird.f32 %v737
        %vm744 = vmor %vm742, %vm743
        %v745 = vsel %vm744, %v737, %v741
        %v746 = vand.u32 2147483647, %v736
        %vm747 = vcmp.eq.f32.partialorder %v746, 8.507059e+37
        %v748 = vand.u32 %v736, 2147483648
        %v749 = vor.u32 1.1754944e-38, %v748
        %v750 = vsel %vm747, %v749, %v745
        %v751 = vmul.f32 %v733, %v750
        %v752 = vunpack.c.l.bf16 %v409
        %v753 = vunpack.c.l.bf16 %v410
        %v754 = vunpack.c.l.bf16 %v411
        %v755 = vunpack.c.l.bf16 %v412
        %v756 = vunpack.c.l.bf16 %v413
        %v757 = vunpack.c.l.bf16 %v414
        %v758 = vunpack.c.l.bf16 %v415
        %v759 = vunpack.c.l.bf16 %v416
        %v760 = vperm.slane %v751, 0
        %v761 = vlaneseq
        %v762 = vshrl.u32 %v761, 7
        %764 = vset.pattern.permute.xlu0 %v762
        %765 = vperm.xlu0 %764, %v760
        %v766 = vpop.permute.xlu0 %765
        %v767 = vperm.slane %v751, 1
        %v768 = vlaneseq
        %v769 = vshrl.u32 %v768, 7
        %771 = vset.pattern.permute.xlu0 %v769
        %772 = vperm.xlu0 %771, %v767
        %v773 = vpop.permute.xlu0 %772
        %v774 = vperm.slane %v751, 2
        %v775 = vlaneseq
        %v776 = vshrl.u32 %v775, 7
        %778 = vset.pattern.permute.xlu0 %v776
        %779 = vperm.xlu0 %778, %v774
        %v780 = vpop.permute.xlu0 %779
        %v781 = vperm.slane %v751, 3
        %v782 = vlaneseq
        %v783 = vshrl.u32 %v782, 7
        %785 = vset.pattern.permute.xlu0 %v783
        %786 = vperm.xlu0 %785, %v781
        %v787 = vpop.permute.xlu0 %786
        %v788 = vperm.slane %v751, 4
        %v789 = vlaneseq
        %v790 = vshrl.u32 %v789, 7
        %792 = vset.pattern.permute.xlu0 %v790
        %793 = vperm.xlu0 %792, %v788
        %v794 = vpop.permute.xlu0 %793
        %v795 = vperm.slane %v751, 5
        %v796 = vlaneseq
        %v797 = vshrl.u32 %v796, 7
        %799 = vset.pattern.permute.xlu0 %v797
        %800 = vperm.xlu0 %799, %v795
        %v801 = vpop.permute.xlu0 %800
        %v802 = vperm.slane %v751, 6
        %v803 = vlaneseq
        %v804 = vshrl.u32 %v803, 7
        %806 = vset.pattern.permute.xlu0 %v804
        %807 = vperm.xlu0 %806, %v802
        %v808 = vpop.permute.xlu0 %807
        %v809 = vperm.slane %v751, 7
        %v810 = vlaneseq
        %v811 = vshrl.u32 %v810, 7
        %813 = vset.pattern.permute.xlu0 %v811
        %814 = vperm.xlu0 %813, %v809
        %v815 = vpop.permute.xlu0 %814
        %v816 = vmul.f32 %v766, %v752
        %v817 = vmul.f32 %v773, %v753
        %v818 = vmul.f32 %v780, %v754
        %v819 = vmul.f32 %v787, %v755
        %v820 = vmul.f32 %v794, %v756
        %v821 = vmul.f32 %v801, %v757
        %v822 = vmul.f32 %v808, %v758
        %v823 = vmul.f32 %v815, %v759
        %v824 = vsel %vm452, %v816, 0.0
        %v825 = vrot.slane %v824, 4
        %v826 = vadd.f32 %v824, %v825
        %v827 = vrot.slane %v826, 2
        %v828 = vadd.f32 %v826, %v827
        %v829 = vrot.slane %v828, 1
        %v830 = vadd.f32 %v828, %v829
        %v831 = vsel %vm452, %v817, 0.0
        %v832 = vrot.slane %v831, 4
        %v833 = vadd.f32 %v831, %v832
        %v834 = vrot.slane %v833, 2
        %v835 = vadd.f32 %v833, %v834
        %v836 = vrot.slane %v835, 1
        %v837 = vadd.f32 %v835, %v836
        %v838 = vsel %vm452, %v818, 0.0
        %v839 = vrot.slane %v838, 4
        %v840 = vadd.f32 %v838, %v839
        %v841 = vrot.slane %v840, 2
        %v842 = vadd.f32 %v840, %v841
        %v843 = vrot.slane %v842, 1
        %v844 = vadd.f32 %v842, %v843
        %v845 = vsel %vm452, %v819, 0.0
        %v846 = vrot.slane %v845, 4
        %v847 = vadd.f32 %v845, %v846
        %v848 = vrot.slane %v847, 2
        %v849 = vadd.f32 %v847, %v848
        %v850 = vrot.slane %v849, 1
        %v851 = vadd.f32 %v849, %v850
        %v852 = vsel %vm452, %v820, 0.0
        %v853 = vrot.slane %v852, 4
        %v854 = vadd.f32 %v852, %v853
        %v855 = vrot.slane %v854, 2
        %v856 = vadd.f32 %v854, %v855
        %v857 = vrot.slane %v856, 1
        %v858 = vadd.f32 %v856, %v857
        %v859 = vsel %vm452, %v821, 0.0
        %v860 = vrot.slane %v859, 4
        %v861 = vadd.f32 %v859, %v860
        %v862 = vrot.slane %v861, 2
        %v863 = vadd.f32 %v861, %v862
        %v864 = vrot.slane %v863, 1
        %v865 = vadd.f32 %v863, %v864
        %v866 = vsel %vm452, %v822, 0.0
        %v867 = vrot.slane %v866, 4
        %v868 = vadd.f32 %v866, %v867
        %v869 = vrot.slane %v868, 2
        %v870 = vadd.f32 %v868, %v869
        %v871 = vrot.slane %v870, 1
        %v872 = vadd.f32 %v870, %v871
        %v873 = vsel %vm452, %v823, 0.0
        %v874 = vrot.slane %v873, 4
        %v875 = vadd.f32 %v873, %v874
        %v876 = vrot.slane %v875, 2
        %v877 = vadd.f32 %v875, %v876
        %v878 = vrot.slane %v877, 1
        %v879 = vadd.f32 %v877, %v878
        %v880 = vadd.f32 %v830, 0.0
        %v881 = vadd.f32 %v837, 0.0
        %v882 = vadd.f32 %v844, 0.0
        %v883 = vadd.f32 %v851, 0.0
        %v884 = vadd.f32 %v858, 0.0
        %v885 = vadd.f32 %v865, 0.0
        %v886 = vadd.f32 %v872, 0.0
        %v887 = vadd.f32 %v879, 0.0
        %v888 = vunpack.c.l.bf16 %v547
        %v889 = vunpack.c.l.bf16 %v548
        %v890 = vunpack.c.l.bf16 %v549
        %v891 = vunpack.c.l.bf16 %v550
        %v892 = vunpack.c.l.bf16 %v551
        %v893 = vunpack.c.l.bf16 %v552
        %v894 = vunpack.c.l.bf16 %v553
        %v895 = vunpack.c.l.bf16 %v554
        %v896 = vlaneseq
        %v897 = vshrl.u32 %v896, 7
        %v898 = vadd.s32 %v897, 8
        %899 = vset.pattern.permute.xlu0 %v898
        %900 = vperm.xlu0 %899, %v760
        %v901 = vpop.permute.xlu0 %900
        %v902 = vlaneseq
        %v903 = vshrl.u32 %v902, 7
        %v904 = vadd.s32 %v903, 8
        %905 = vset.pattern.permute.xlu0 %v904
        %906 = vperm.xlu0 %905, %v767
        %v907 = vpop.permute.xlu0 %906
        %v908 = vlaneseq
        %v909 = vshrl.u32 %v908, 7
        %v910 = vadd.s32 %v909, 8
        %911 = vset.pattern.permute.xlu0 %v910
        %912 = vperm.xlu0 %911, %v774
        %v913 = vpop.permute.xlu0 %912
        %v914 = vlaneseq
        %v915 = vshrl.u32 %v914, 7
        %v916 = vadd.s32 %v915, 8
        %917 = vset.pattern.permute.xlu0 %v916
        %918 = vperm.xlu0 %917, %v781
        %v919 = vpop.permute.xlu0 %918
        %v920 = vlaneseq
        %v921 = vshrl.u32 %v920, 7
        %v922 = vadd.s32 %v921, 8
        %923 = vset.pattern.permute.xlu0 %v922
        %924 = vperm.xlu0 %923, %v788
        %v925 = vpop.permute.xlu0 %924
        %v926 = vlaneseq
        %v927 = vshrl.u32 %v926, 7
        %v928 = vadd.s32 %v927, 8
        %929 = vset.pattern.permute.xlu0 %v928
        %930 = vperm.xlu0 %929, %v795
        %v931 = vpop.permute.xlu0 %930
        %v932 = vlaneseq
        %v933 = vshrl.u32 %v932, 7
        %v934 = vadd.s32 %v933, 8
        %935 = vset.pattern.permute.xlu0 %v934
        %936 = vperm.xlu0 %935, %v802
        %v937 = vpop.permute.xlu0 %936
        %v938 = vlaneseq
        %v939 = vshrl.u32 %v938, 7
        %v940 = vadd.s32 %v939, 8
        %941 = vset.pattern.permute.xlu0 %v940
        %942 = vperm.xlu0 %941, %v809
        %v943 = vpop.permute.xlu0 %942
        %v944 = vmul.f32 %v901, %v888
        %v945 = vmul.f32 %v907, %v889
        %v946 = vmul.f32 %v913, %v890
        %v947 = vmul.f32 %v919, %v891
        %v948 = vmul.f32 %v925, %v892
        %v949 = vmul.f32 %v931, %v893
        %v950 = vmul.f32 %v937, %v894
        %v951 = vmul.f32 %v943, %v895
        %v952 = vsel %vm452, %v944, 0.0
        %v953 = vrot.slane %v952, 4
        %v954 = vadd.f32 %v952, %v953
        %v955 = vrot.slane %v954, 2
        %v956 = vadd.f32 %v954, %v955
        %v957 = vrot.slane %v956, 1
        %v958 = vadd.f32 %v956, %v957
        %v959 = vsel %vm452, %v945, 0.0
        %v960 = vrot.slane %v959, 4
        %v961 = vadd.f32 %v959, %v960
        %v962 = vrot.slane %v961, 2
        %v963 = vadd.f32 %v961, %v962
        %v964 = vrot.slane %v963, 1
        %v965 = vadd.f32 %v963, %v964
        %v966 = vsel %vm452, %v946, 0.0
        %v967 = vrot.slane %v966, 4
        %v968 = vadd.f32 %v966, %v967
        %v969 = vrot.slane %v968, 2
        %v970 = vadd.f32 %v968, %v969
        %v971 = vrot.slane %v970, 1
        %v972 = vadd.f32 %v970, %v971
        %v973 = vsel %vm452, %v947, 0.0
        %v974 = vrot.slane %v973, 4
        %v975 = vadd.f32 %v973, %v974
        %v976 = vrot.slane %v975, 2
        %v977 = vadd.f32 %v975, %v976
        %v978 = vrot.slane %v977, 1
        %v979 = vadd.f32 %v977, %v978
        %v980 = vsel %vm452, %v948, 0.0
        %v981 = vrot.slane %v980, 4
        %v982 = vadd.f32 %v980, %v981
        %v983 = vrot.slane %v982, 2
        %v984 = vadd.f32 %v982, %v983
        %v985 = vrot.slane %v984, 1
        %v986 = vadd.f32 %v984, %v985
        %v987 = vsel %vm452, %v949, 0.0
        %v988 = vrot.slane %v987, 4
        %v989 = vadd.f32 %v987, %v988
        %v990 = vrot.slane %v989, 2
        %v991 = vadd.f32 %v989, %v990
        %v992 = vrot.slane %v991, 1
        %v993 = vadd.f32 %v991, %v992
        %v994 = vsel %vm452, %v950, 0.0
        %v995 = vrot.slane %v994, 4
        %v996 = vadd.f32 %v994, %v995
        %v997 = vrot.slane %v996, 2
        %v998 = vadd.f32 %v996, %v997
        %v999 = vrot.slane %v998, 1
        %v1000 = vadd.f32 %v998, %v999
        %v1001 = vsel %vm452, %v951, 0.0
        %v1002 = vrot.slane %v1001, 4
        %v1003 = vadd.f32 %v1001, %v1002
        %v1004 = vrot.slane %v1003, 2
        %v1005 = vadd.f32 %v1003, %v1004
        %v1006 = vrot.slane %v1005, 1
        %v1007 = vadd.f32 %v1005, %v1006
        %v1008 = vadd.f32 %v880, %v958
        %v1009 = vadd.f32 %v881, %v965
        %v1010 = vadd.f32 %v882, %v972
        %v1011 = vadd.f32 %v883, %v979
        %v1012 = vadd.f32 %v884, %v986
        %v1013 = vadd.f32 %v885, %v993
        %v1014 = vadd.f32 %v886, %v1000
        %v1015 = vadd.f32 %v887, %v1007
        %v1016 = vpack.c.bf16 %v1008, %v1008
        %v1017 = vpack.c.bf16 %v1009, %v1009
        %v1018 = vpack.c.bf16 %v1010, %v1010
        %v1019 = vpack.c.bf16 %v1011, %v1011
        %v1020 = vpack.c.bf16 %v1012, %v1012
        %v1021 = vpack.c.bf16 %v1013, %v1013
        %v1022 = vpack.c.bf16 %v1014, %v1014
        %v1023 = vpack.c.bf16 %v1015, %v1015
        %v1024 = vld [vmem:[#allocation9] sm:$0xf]
        %v1025 = vld [vmem:[#allocation9 + $0x4] sm:$0xf]
        %v1026 = vld [vmem:[#allocation9 + $0x8] sm:$0xf]
        %v1027 = vld [vmem:[#allocation9 + $0xc] sm:$0xf]
        %v1028 = vld [vmem:[%s7] sm:$0x1]
        %v1030 = vperm.slane %v1028, 0
        %v1040 = vunpack.c.l.b16 %v1016
        %v1041 = vunpack.c.l.b16 %v1017
        %v1042 = vunpack.c.l.b16 %v1018
        %v1043 = vunpack.c.l.b16 %v1019
        %v1044 = vunpack.c.l.b16 %v1020
        %v1045 = vunpack.c.l.b16 %v1021
        %v1046 = vunpack.c.l.b16 %v1022
        %v1047 = vunpack.c.l.b16 %v1023
        %v1048 = vsel %vm682, %v1041, %v1040
        %v1049 = vsel %vm684, %v1042, %v1048
        %v1050 = vsel %vm686, %v1043, %v1049
        %v1051 = vsel %vm688, %v1044, %v1050
        %v1052 = vsel %vm690, %v1045, %v1051
        %v1053 = vsel %vm692, %v1046, %v1052
        %v1054 = vsel %vm694, %v1047, %v1053
        %v1055 = vpack.c.b16 %v1054, %v1054
        %v1060 = vunpack.c.l.b16 %v1024
        %v1061 = vunpack.c.l.b16 %v1025
        %v1062 = vunpack.c.l.b16 %v1026
        %v1063 = vunpack.c.l.b16 %v1027
        %v1064 = vpack.c.b16 %v1061, %v1060
        %v1065 = vpack.c.b16 %v1063, %v1062
        %v1069 = vsel %vm452, %v1055, 0
        %1071 = vmatpush.bf16.msra.mxu0 0
        %1072 = vmatpush.bf16.msra.mxu0 0
        %1073 = vmatpush.bf16.msra.mxu0 0
        %1074 = vmatpush.bf16.msra.mxu0 0
        %1075 = vmatpush.bf16.msra.mxu0 0
        %1076 = vmatpush.bf16.msra.mxu0 0
        %1077 = vmatpush.bf16.msra.mxu0 %v1065
        %1078 = vmatpush.bf16.msra.mxu0 %v1064
        %1079 = vmatmul.bf16.gmra.mxu0 %v1069
        %v1080 = vpop.f32.mrf.mxu0
        %v1081 = vadd.f32 %v1030, %v1080
        %v1082 = vpop.f32.mrf.mxu0
        %1083 = vdwg.mxu0
        %1084 = vst [vmem:[%s399] sm:$0xff] %v1081
        %s1085 = sand.u32 %s216, 1
        %s1086 = scalar_lea.sflag [#allocation5], %s1085
        %s1087 = sand.u32 %s216, 1
        %s1088 = smul.addr %s1087, 8
        %s1089 = scalar_lea.vmem [#allocation11], %s1088
        // Predicated region
        $region69: #{tpu_custom_call.1} parent=51 // pred_check
          %p1090 = pneg %p226
        $region70: #{tpu_custom_call.1} parent=51 // pred_check_branch
          %1092 = sbr.rel (%p1090) target = $region72
        $region71: #{tpu_custom_call.1} parent=51 // pred_region
          %1094 = vsyncadd %s1086, 0
          %s1095 = smul.addr %s30, 8
          %s1096 = scalar_lea.hbm %s8, %s1095
          %s1098 = sshll.u32 %s1089, 4
          %s1099 = int_to_ptr.vmem [resolvable:$true] %s1098
          %s1100 = sshll.u32 %s1096, 4
          %s1101 = int_to_ptr.hbm [resolvable:$true] %s1100
          %1103 = dma.vmem_to_hbm [thread:$0]  %s1099, 128, %s1101, %s1086
        $region72: #{tpu_custom_call.1} parent=51 // pred_fallthru
          _
      $region52: #{tpu_custom_call.1} parent=5 // pred_fallthru
        _
      %p1104 = scmp.le.s32.totalorder 2, %s25
      // Predicated region
      $region73: #{tpu_custom_call.1} parent=5 // pred_check
        %p1105 = pneg %p1104
      $region74: #{tpu_custom_call.1} parent=5 // pred_check_branch
        %1107 = sbr.rel (%p1105) target = $region76
      $region75: #{tpu_custom_call.1} parent=5 // pred_region
        %s1108 = ssub.s32 %s25, 2
        // Predicated region
        $region77: #{tpu_custom_call.1} parent=75 // pred_check
          %p1109 = pneg %p232
        $region78: #{tpu_custom_call.1} parent=75 // pred_check_branch
          %1111 = sbr.rel (%p1109) target = $region80
        $region79: #{tpu_custom_call.1} parent=75 // pred_region
          %s1112 = sand.u32 %s217, 1
          %s1113 = scalar_lea.sflag [#allocation5], %s1112
          %s1114 = sand.u32 %s217, 1
          %s1115 = smul.addr %s1114, 8
          %s1116 = scalar_lea.vmem [#allocation11], %s1115
          %1118 = dma.done %s1113, 128
        $region80: #{tpu_custom_call.1} parent=75 // pred_fallthru
          _
      $region76: #{tpu_custom_call.1} parent=5 // pred_fallthru
        _
    $region6: #{tpu_custom_call.1} parent=1 // loop_footer
      %s29 = sadd.s32 1, %s25
    $region7: #{tpu_custom_call.1} parent=1 // loop_footer_branch
      %24 = sbr.rel target = $region3
    $region8: #{tpu_custom_call.1} parent=1 // loop_exit
      _
    %1119 = vsyncpa [#allocation4], 1
    %s1120 = scalar_lea.sflag [#allocation4], 1
    %1121 = vsyncpa %s1120, 1
    %1122 = vsyncpa [#allocation7], 1
    %s1123 = scalar_lea.sflag [#allocation7], 1
    %1124 = vsyncpa %s1123, 1
    %1125 = vsyncpa [#allocation10], 1
    %1126 = vsyncpa [#allocation5], 1
    %s1127 = scalar_lea.sflag [#allocation5], 1
    %1128 = vsyncpa %s1127, 1

</llo_original>
